<compile_context>
chip_gen: v7x
topology: tpu7x:2x2x1
jax: 0.10.0
libtpu: 0.0.40
codegen_flags: <defaults>
</compile_context>

<pallas_src>
import functools

import jax
import jax.numpy as jnp
from jax.experimental import pallas as pl
from jax.experimental.pallas import tpu as pltpu


def _round_up(v, m):
    return ((v + m - 1) // m) * m


def _softmax_bandit_kernel(x_ref, w_ref, bias_ref, wmm_ref, o_ref, *, apply_bias):
    # x_ref:    (TB, 1)     f32 VMEM  (batch tile)
    # w_ref:    (1, n_pad)  f32 VMEM  (W^T, resident across the grid)
    # bias_ref: (1, n_pad)  f32 VMEM  (0 real arms, -1e30 padded; resident)
    # wmm_ref:  (2,)        f32 SMEM  ([max(W), min(W)])
    # o_ref:    (TB, n_pad) f32 VMEM
    x = x_ref[...]                                    # (TB, 1)
    logits = x * w_ref[...]                           # (TB, n_pad) outer product (VPU)
    if apply_bias:                                    # only when arm axis is padded
        logits = logits + bias_ref[...]               # single vadd; padded cols -> -1e30

    # Exact per-row max with no cross-lane reduction (rank-1 logits).
    w_max = wmm_ref[0]
    w_min = wmm_ref[1]
    m = jnp.where(x >= 0.0, x * w_max, x * w_min)     # (TB, 1)

    e = jnp.exp(logits - m)                           # EUP; padded cols underflow to 0
    s = jnp.sum(e, axis=-1, keepdims=True)            # (TB, 1)
    inv = pl.reciprocal(s)                            # exact: rows must sum to 1
    o_ref[...] = (e * inv).astype(o_ref.dtype)


def softmax_bandit_forward(x, w, *, tile_b=4096, vmem_budget_bytes=32 * 1024 * 1024):
    """x: (B, 1) f32; w: (n_arms, 1) f32 (PyTorch nn.Linear weight layout).

    Returns softmax(x @ w.T, axis=1) with shape (B, n_arms), f32.
    """
    x = x.astype(jnp.float32)
    w = w.astype(jnp.float32)
    B = x.shape[0]
    n_arms = w.shape[0]

    # Arm axis: keep unpadded whenever legal (block last dim == full extent);
    # pad to a 128-lane multiple only for large, non-aligned arm counts.
    if n_arms < 128 or n_arms % 128 == 0:
        n_pad = n_arms
    else:
        n_pad = _round_up(n_arms, 128)
    apply_bias = n_pad != n_arms

    # Batch tile: bounded by an explicit VMEM budget (x block lane-pads to 128
    # lanes per row in VMEM; out block lane-pads to max(n_pad,128)), at least 8
    # rows (sublane), and chosen so big batches produce >= 2 grid steps (v7x
    # has 2 TensorCores).
    lane_n = max(n_pad, 128)
    per_row_bytes = 4 * (2 * 128 + 4 * lane_n)        # x dbuf + out dbuf + ~2 temps
    tb_vmem_cap = max(8, (vmem_budget_bytes // per_row_bytes) // 8 * 8)
    tb = max(8, min(tile_b, tb_vmem_cap, _round_up(pl.cdiv(B, 2), 8)))
    b_pad = _round_up(B, tb)
    grid = (b_pad // tb,)

    # Resident (1, n_pad) weights (W^T) and additive padding bias.
    if apply_bias:
        w_t = jnp.zeros((1, n_pad), jnp.float32).at[0, :n_arms].set(w[:, 0])
        bias = jnp.full((1, n_pad), -1e30, jnp.float32).at[0, :n_arms].set(0.0)
    else:
        w_t = w.reshape(1, n_arms)
        bias = jnp.zeros((1, n_arms), jnp.float32)    # unused; add is compiled out

    # Row-max selectors, computed once on the real (unpadded) weights.
    wmm = jnp.stack([jnp.max(w), jnp.min(w)]).astype(jnp.float32)        # (2,)
    x_p = jnp.pad(x, ((0, b_pad - B), (0, 0))) if b_pad != B else x

    kernel = functools.partial(_softmax_bandit_kernel, apply_bias=apply_bias)

    out = pl.pallas_call(
        kernel,
        out_shape=jax.ShapeDtypeStruct((b_pad, n_pad), jnp.float32),
        grid=grid,
        in_specs=[
            pl.BlockSpec((tb, 1), lambda i: (i, 0)),            # batch tile of x
            pl.BlockSpec((1, n_pad), lambda i: (0, 0)),          # W^T resident
            pl.BlockSpec((1, n_pad), lambda i: (0, 0)),          # pad-bias resident
            pl.BlockSpec(memory_space=pltpu.MemorySpace.SMEM),   # [w_max, w_min]
        ],
        out_specs=pl.BlockSpec((tb, n_pad), lambda i: (i, 0)),
        compiler_params=pltpu.CompilerParams(
            dimension_semantics=("parallel",),        # shard batch across TCs (v7x)
            vmem_limit_bytes=48 * 1024 * 1024,        # headroom under v7x 64 MiB
        ),
        cost_estimate=pl.CostEstimate(                # unpadded, real work only
            flops=4 * B * n_arms,
            transcendentals=B * n_arms,
            bytes_accessed=4 * (B * n_arms + B + n_arms),
        ),
    )(x_p, w_t, bias, wmm)

    if b_pad != B or n_pad != n_arms:
        out = out[:B, :n_arms]
    return out


def init_params(key, n_arms):
    # nn.Linear(1, n_arms) default init: U(-1/sqrt(fan_in), 1/sqrt(fan_in)),
    # fan_in = 1 -> U(-1, 1). Weight shape (n_arms, 1).
    return jax.random.uniform(key, (n_arms, 1), dtype=jnp.float32,
                              minval=-1.0, maxval=1.0)


if __name__ == "__main__":
    key = jax.random.PRNGKey(0)
    k_w, k_x = jax.random.split(key)

    batch = 2
    n_arms = 8

    w = init_params(k_w, n_arms)                       # (n_arms, 1) == pref.weight
    x = jax.random.normal(k_x, (batch, 1), dtype=jnp.float32)

    out = softmax_bandit_forward(x, w)
    out = jax.block_until_ready(out)

    # Reference check against plain JAX (same semantics as the PyTorch module).
    ref = jax.nn.softmax(x @ w.T, axis=1)
    assert out.shape == (batch, n_arms)
    assert jnp.allclose(out, ref, atol=1e-5, rtol=1e-5)
    assert jnp.allclose(jnp.sum(out, axis=1), 1.0, atol=1e-5)

    # TODO(synk): act() (Categorical sampling / log_prob) and policy() are host-side
    # utilities, intentionally not kernelized.
    print("KERNEL_OK")
</pallas_src>

<mosaic_0001>
module attributes {stable_mosaic.version = 11 : i64} {
  func.func @_softmax_bandit_kernel(%arg0: i32, %arg1: memref<8x1xf32, #tpu.memory_space<vmem>>, %arg2: memref<1x8xf32, #tpu.memory_space<vmem>>, %arg3: memref<1x8xf32, #tpu.memory_space<vmem>>, %arg4: memref<2xf32, #tpu.memory_space<smem>>, %arg5: memref<8x8xf32, #tpu.memory_space<vmem>>) attributes {dimension_semantics = [#tpu.dimension_semantics<parallel>], iteration_bounds = array<i64: 1>, scalar_prefetch = 0 : i64, scratch_operands = 0 : i64, tpu.core_type = #tpu.core_type<tc>, window_params = [{transform_indices = @transform_0, window_bounds = array<i64: 8, 1>}, {pipeline_mode = #tpu.pipeline_mode<synchronous>, transform_indices = @transform_1, window_bounds = array<i64: 1, 8>}, {pipeline_mode = #tpu.pipeline_mode<synchronous>, transform_indices = @transform_2, window_bounds = array<i64: 1, 8>}, {transform_indices = @transform_3, window_bounds = array<i64: 2>}, {transform_indices = @transform_4, window_bounds = array<i64: 8, 8>}]} {
    %c0 = arith.constant 0 : index
    %c0_0 = arith.constant 0 : index
    %0 = vector.load %arg1[%c0, %c0_0] : memref<8x1xf32, #tpu.memory_space<vmem>>, vector<8x1xf32>
    %c0_1 = arith.constant 0 : index
    %c0_2 = arith.constant 0 : index
    %1 = vector.load %arg2[%c0_1, %c0_2] : memref<1x8xf32, #tpu.memory_space<vmem>>, vector<1x8xf32>
    %2 = vector.broadcast %0 : vector<8x1xf32> to vector<8x8xf32>
    %3 = vector.broadcast %1 : vector<1x8xf32> to vector<8x8xf32>
    %4 = arith.mulf %2, %3 : vector<8x8xf32>
    %c0_3 = arith.constant 0 : index
    %5 = memref.load %arg4[%c0_3] : memref<2xf32, #tpu.memory_space<smem>>
    %c1 = arith.constant 1 : index
    %6 = memref.load %arg4[%c1] : memref<2xf32, #tpu.memory_space<smem>>
    %cst = arith.constant 0.000000e+00 : f32
    %7 = vector.broadcast %cst : f32 to vector<8x1xf32>
    %8 = arith.cmpf oge, %0, %7 : vector<8x1xf32>
    %9 = vector.broadcast %5 : f32 to vector<8x1xf32>
    %10 = arith.mulf %0, %9 : vector<8x1xf32>
    %11 = vector.broadcast %6 : f32 to vector<8x1xf32>
    %12 = arith.mulf %0, %11 : vector<8x1xf32>
    %13 = arith.select %8, %10, %12 : vector<8x1xi1>, vector<8x1xf32>
    %14 = vector.broadcast %13 : vector<8x1xf32> to vector<8x8xf32>
    %15 = arith.subf %4, %14 : vector<8x8xf32>
    %16 = math.exp %15 : vector<8x8xf32>
    %cst_4 = arith.constant dense<0.000000e+00> : vector<8xf32>
    %17 = vector.multi_reduction <add>, %16, %cst_4 [1] : vector<8x8xf32> to vector<8xf32>
    %18 = vector.shape_cast %17 : vector<8xf32> to vector<8x1xf32>
    %19 = tpu.reciprocal %18 : vector<8x1xf32> -> vector<8x1xf32>
    %20 = vector.broadcast %19 : vector<8x1xf32> to vector<8x8xf32>
    %21 = arith.mulf %16, %20 : vector<8x8xf32>
    %c0_5 = arith.constant 0 : index
    %c0_6 = arith.constant 0 : index
    %22 = vector.load %arg5[%c0_5, %c0_6] : memref<8x8xf32, #tpu.memory_space<vmem>>, vector<8x8xf32>
    tpu.vector_store %arg5[%c0_5, %c0_6], %21 {strides = array<i32>} : memref<8x8xf32, #tpu.memory_space<vmem>>, vector<8x8xf32>,
    return
  }
  func.func @transform_0(%arg0: i32) -> (i32, i32) {
    %c0_i32 = arith.constant 0 : i32
    %c0_i32_0 = arith.constant 0 : i32
    return %arg0, %c0_i32 : i32, i32
  }
  func.func @transform_1(%arg0: i32) -> (i32, i32) {
    %c0_i32 = arith.constant 0 : i32
    %c0_i32_0 = arith.constant 0 : i32
    %c0_i32_1 = arith.constant 0 : i32
    return %c0_i32, %c0_i32_0 : i32, i32
  }
  func.func @transform_2(%arg0: i32) -> (i32, i32) {
    %c0_i32 = arith.constant 0 : i32
    %c0_i32_0 = arith.constant 0 : i32
    %c0_i32_1 = arith.constant 0 : i32
    return %c0_i32, %c0_i32_0 : i32, i32
  }
  func.func @transform_3(%arg0: i32) -> i32 {
    %c0_i32 = arith.constant 0 : i32
    %c0_i32_0 = arith.constant 0 : i32
    return %c0_i32 : i32
  }
  func.func @transform_4(%arg0: i32) -> (i32, i32) {
    %c0_i32 = arith.constant 0 : i32
    %c0_i32_0 = arith.constant 0 : i32
    return %arg0, %c0_i32 : i32, i32
  }
}

</mosaic_0001>

<llo_original>
// kernel: tpu_custom_call.1
$region0: #{tpu_custom_call.1}
  #allocation0 [shape = 'u32[]', space=smem, size = 0x4, offset = 0x4, fixed_abs, tag = 'smem constant byte address 0x4 - core index']
  #allocation1 [shape = 'u32[144,128]{1,0:T(1,128)}', space=vmem, size = 0x12000, scoped, tag = 'internal scratch']
  %s0 = inlined_call_operand.vmem [shape: f32[8,1], index: 0, kind: input, shape index: {}]
  %s1 = inlined_call_operand.vmem [shape: f32[1,8], index: 1, kind: input, shape index: {}]
  %s2 = inlined_call_operand.vmem [shape: f32[1,8], index: 2, kind: input, shape index: {}]
  %s3 = inlined_call_operand.vmem [shape: f32[2], index: 3, kind: input, shape index: {}]
  %s4 = inlined_call_operand.hbm [shape: f32[8,8], index: 4, kind: output, shape index: {}]
  %s5 = sld [smem:[#allocation0]]
  $region30: #{tpu_custom_call.1} parent=0
    _
  %s7 = ssub.s32 1, %s5
  %s8 = scalar_select 0, %s7, %s5
  $region1: #{tpu_custom_call.1} parent=0
    #allocation2 [shape = 'u8[512]{0}', space=smem, size = 0x200, scoped, tag = 'input window, operand 3, single buffered']
    #allocation3 [shape = 's32[1]{0}', space=sflag, size = 0x4, scoped, tag = 'scoped memory for tpu_custom_call.1']
    #allocation4 [shape = 's32[1]{0}', space=sflag, size = 0x4, scoped, tag = 'scoped memory for tpu_custom_call.1']
    #allocation5 [shape = 'u8[4096]{0}', space=vmem, size = 0x1000, scoped, tag = 'output window, operand 0, single buffered']
    %9 = vsyncpa [#allocation4], 0
    %10 = vsyncpa [#allocation3], 0
    // Predicated region
    $region2: #{tpu_custom_call.1} parent=1 // pred_check
      _
    $region3: #{tpu_custom_call.1} parent=1 // pred_check_branch
      %12 = sbr.rel (0) target = $region5
    $region4: #{tpu_custom_call.1} parent=1 // pred_region
      _
    $region5: #{tpu_custom_call.1} parent=1 // pred_fallthru
      _
    // Predicated region
    $region6: #{tpu_custom_call.1} parent=1 // pred_check
      _
    $region7: #{tpu_custom_call.1} parent=1 // pred_check_branch
      %14 = sbr.rel (0) target = $region9
    $region8: #{tpu_custom_call.1} parent=1 // pred_region
      _
    $region9: #{tpu_custom_call.1} parent=1 // pred_fallthru
      _
    // Predicated region
    $region10: #{tpu_custom_call.1} parent=1 // pred_check
      _
    $region11: #{tpu_custom_call.1} parent=1 // pred_check_branch
      %16 = sbr.rel (0) target = $region13
    $region12: #{tpu_custom_call.1} parent=1 // pred_region
      _
    $region13: #{tpu_custom_call.1} parent=1 // pred_fallthru
      _
    // Predicated region
    $region14: #{tpu_custom_call.1} parent=1 // pred_check
      _
    $region15: #{tpu_custom_call.1} parent=1 // pred_check_branch
      %18 = sbr.rel (0) target = $region17
    $region16: #{tpu_custom_call.1} parent=1 // pred_region
      %s20 = ssub.s32 16, 16
      %21 = vsyncadd [#allocation4], %s20
      %s23 = sshll.u32 %s3, 4
      %s24 = int_to_ptr.vmem [resolvable:$true] %s23
      %26 = dma.vmem_to_smem %s24, 16, [#allocation2], [#allocation4]
    $region17: #{tpu_custom_call.1} parent=1 // pred_fallthru
      _
    // Predicated region
    $region18: #{tpu_custom_call.1} parent=1 // pred_check
      _
    $region19: #{tpu_custom_call.1} parent=1 // pred_check_branch
      %28 = sbr.rel (0) target = $region21
    $region20: #{tpu_custom_call.1} parent=1 // pred_region
      %29 = dma.done [#allocation4], 16
    $region21: #{tpu_custom_call.1} parent=1 // pred_fallthru
      _
    %30 = sfence
    %v31 = vld [vmem:[%s0] sm:$0xff]
    %v32 = vld [vmem:[%s1] sm:$0x1]
    %34 = vset.pattern.permute.xlu0 0
    %35 = vperm.xlu0 %34, %v31
    %v36 = vpop.permute.xlu0 %35
    %v39 = vlaneseq
    %v40 = vshrl.u32 %v39, 7
    %v41 = vsub.s32 0, %v40
    %v42 = vrot.slane %v32, %v41
    %v44 = vmul.f32 %v36, %v42
    %s45 = sld [smem:[#allocation2]]
    %s46 = sld [smem:[#allocation2 + $0x1]]
    %vm47 = vcmp.ge.f32.partialorder %v31, 0.0
    %v48 = vstv %s45
    %v49 = vmul.f32 %v31, %v48
    %v50 = vstv %s46
    %v51 = vmul.f32 %v31, %v50
    %v52 = vsel %vm47, %v49, %v51
    %54 = vset.pattern.permute.xlu0 0
    %55 = vperm.xlu0 %54, %v52
    %v56 = vpop.permute.xlu0 %55
    %v58 = vsub.f32 %v44, %v56
    %v59 = vmul.f32 %v58, 1.442695
    %v60 = vpow.pop %v59
    %vm61 = vcmask 64512
    %v62 = vsel %vm61, %v60, 0.0
    %63 = vadd.xlane.f32.xlu0 %v62
    %v64 = vpop.xlane.xlu0 %63
    %v65 = vrcp.pop %v64
    %v66 = vmul.f32 %v60, %v65
    %67 = vst.msk [vmem:[#allocation5] sm:$0xff] %vm61, %v66
    // Predicated region
    $region22: #{tpu_custom_call.1} parent=1 // pred_check
      _
    $region23: #{tpu_custom_call.1} parent=1 // pred_check_branch
      %69 = sbr.rel (0) target = $region25
    $region24: #{tpu_custom_call.1} parent=1 // pred_region
      %s71 = ssub.s32 128, 128
      %72 = vsyncadd [#allocation3], %s71
      %s74 = sshll.u32 [#allocation5], 4
      %s75 = int_to_ptr.vmem [resolvable:$true] %s74
      %77 = dma.vmem_to_hbm [thread:$0]  %s75, 128, %s4, [#allocation3]
    $region25: #{tpu_custom_call.1} parent=1 // pred_fallthru
      _
    // Predicated region
    $region26: #{tpu_custom_call.1} parent=1 // pred_check
      _
    $region27: #{tpu_custom_call.1} parent=1 // pred_check_branch
      %79 = sbr.rel (0) target = $region29
    $region28: #{tpu_custom_call.1} parent=1 // pred_region
      %80 = dma.done [#allocation3], 128
    $region29: #{tpu_custom_call.1} parent=1 // pred_fallthru
      _
    %81 = vsyncpa [#allocation3], 1
    %82 = vsyncpa [#allocation4], 1

</llo_original>
